<compile_context>
chip_gen: v5e
topology: v5e:2x2
jax: 0.10.0
libtpu: 0.0.40
codegen_flags: <defaults>
</compile_context>

<pallas_src>
import jax
import jax.numpy as jnp
from jax.experimental import pallas as pl
from jax.experimental.pallas import tpu as pltpu


# ----------------------------- sizing helpers ------------------------------

def _round_up(x, m):
    return (x + m - 1) // m * m


def _vmem_budget_bytes():
    """3/4 of physical VMEM on 128-MiB parts (v5e/v6e), 1/2 on v7x-sized parts."""
    phys = None
    try:
        phys = getattr(pltpu.get_tpu_info(), "vmem_capacity_bytes", None)
    except Exception:
        phys = None
    if not phys:
        phys = 64 * 1024 * 1024  # conservative (v7x-sized) fallback
    if phys >= 100 * 1024 * 1024:      # v5e / v6e: 128 MiB physical
        return (phys * 3) // 4
    return phys // 2                   # v7x: 64 MiB, keep headroom


def _pick_tm(M, bytes_per_row, budget, *, align=16, tm_cap=1024,
             min_tiles=2, min_tm=0):
    """Largest row tile fitting the VMEM budget; MXU/layout-friendly rounding."""
    budget = max(int(budget), bytes_per_row * align)
    tm = min(budget // max(bytes_per_row, 1), tm_cap)
    # Keep >= min_tiles row tiles so the "parallel" axis can be split across
    # v7x's two TensorCores (no-op for small M / single-TC chips).
    if M > 2 * align * min_tiles:
        tm = min(tm, _round_up(-(-M // min_tiles), align))
    tm = min(tm, _round_up(M, align))
    if min_tm:
        tm = max(tm, min(min_tm, _round_up(M, align)))
    # MXU-friendly rounding: 256/128 multiples for big problems, else 16.
    if M >= 256 and tm >= 256:
        tm = (tm // 256) * 256
    elif M >= 128 and tm >= 128:
        tm = (tm // 128) * 128
    else:
        tm = (tm // align) * align
    return max(align, int(tm))


def _pick_tn(d_out, d_in, w_itemsize, budget):
    """Lane-dense N tile whose double-buffered W slab fits `budget`.
    No 384: it leaves a ragged 128-wide pass on the 2x256x256 MXU (v6e/v7x)."""
    if d_out % 128 != 0:
        return d_out
    for cand in (512, 256, 128):
        if d_out % cand == 0 and 2 * d_in * cand * w_itemsize <= budget:
            return cand
    return 128


# --------------------------- standalone LayerNorm ---------------------------

def layernorm_kernel(x_ref, gamma_ref, beta_ref, o_ref):
    x = x_ref[...].astype(jnp.float32)
    mean = jnp.mean(x, axis=-1, keepdims=True)
    xc = x - mean
    var = jnp.mean(xc * xc, axis=-1, keepdims=True)           # biased, like torch
    inv = jax.lax.rsqrt(var + 1e-5)                            # nn.LayerNorm eps
    y = xc * inv * gamma_ref[...].astype(jnp.float32) \
        + beta_ref[...].astype(jnp.float32)
    o_ref[...] = y.astype(o_ref.dtype)


def layernorm_pallas(x2d, gamma, beta):
    M, D = x2d.shape
    itemsize = x2d.dtype.itemsize
    budget = _vmem_budget_bytes()

    # x is triple-buffered (HBM-bound kernel), output double-buffered.
    per_row = 3 * D * itemsize + 2 * D * itemsize
    tm = _pick_tm(M, per_row, int(budget * 0.6), min_tm=512)

    Mp = _round_up(M, tm)
    xp = jnp.pad(x2d, ((0, Mp - M), (0, 0))) if Mp != M else x2d

    cost = pl.CostEstimate(
        flops=int(8 * Mp * D),
        transcendentals=int(Mp),
        bytes_accessed=int(2 * Mp * D * itemsize + 2 * D * 4),
    )

    out = pl.pallas_call(
        layernorm_kernel,
        out_shape=jax.ShapeDtypeStruct((Mp, D), x2d.dtype),
        grid_spec=pltpu.PrefetchScalarGridSpec(
            num_scalar_prefetch=0,
            grid=(Mp // tm,),
            in_specs=[
                pl.BlockSpec((tm, D), lambda i: (i, 0),
                             pipeline_mode=pl.Buffered(3)),
                pl.BlockSpec((1, D), lambda i: (0, 0)),
                pl.BlockSpec((1, D), lambda i: (0, 0)),
            ],
            out_specs=pl.BlockSpec((tm, D), lambda i: (i, 0)),
        ),
        compiler_params=pltpu.CompilerParams(
            dimension_semantics=("parallel",),
            vmem_limit_bytes=int(budget),
        ),
        cost_estimate=cost,
    )(xp, gamma.reshape(1, D), beta.reshape(1, D))
    return out[:M] if Mp != M else out


# ----------------------- fused LayerNorm + Linear (fn) -----------------------

def prenorm_linear_resident_kernel(x_ref, w_ref, b_ref, o_ref):
    # LN statistics in f32; the LN affine is already folded into W/b.
    x = x_ref[...].astype(jnp.float32)
    mean = jnp.mean(x, axis=-1, keepdims=True)
    xc = x - mean
    var = jnp.mean(xc * xc, axis=-1, keepdims=True)
    inv = jax.lax.rsqrt(var + 1e-5)
    xn = (xc * inv).astype(w_ref.dtype)                 # bf16 into the MXU
    y = jnp.dot(xn, w_ref[...], preferred_element_type=jnp.float32)
    o_ref[...] = (y + b_ref[...]).astype(o_ref.dtype)


def prenorm_linear_tiled_kernel(x_ref, w_ref, b_ref, o_ref, xn_ref):
    j = pl.program_id(1)

    # Normalize this row tile once; inner ("arbitrary") j axis reuses the
    # bf16 VMEM scratch.
    @pl.when(j == 0)
    def _():
        x = x_ref[...].astype(jnp.float32)
        mean = jnp.mean(x, axis=-1, keepdims=True)
        xc = x - mean
        var = jnp.mean(xc * xc, axis=-1, keepdims=True)
        inv = jax.lax.rsqrt(var + 1e-5)
        xn_ref[...] = (xc * inv).astype(xn_ref.dtype)

    y = jnp.dot(xn_ref[...], w_ref[...], preferred_element_type=jnp.float32)
    o_ref[...] = (y + b_ref[...]).astype(o_ref.dtype)


def prenorm_linear_pallas(x2d, gamma, beta, W, bias, *, force_tiled=False):
    """Fused LayerNorm(dim) + Linear.  LN affine folded into W/b; matmul runs
    on the MXU in bf16 with f32 accumulation."""
    M, D = x2d.shape
    Dk, Dout = W.shape
    assert Dk == D
    itemsize = x2d.dtype.itemsize
    out_itemsize = itemsize
    budget = _vmem_budget_bytes()

    # Fold the LN affine into the Linear (exactly, in f32):
    #   (xn * gamma + beta) @ W + b == xn @ (gamma[:,None] * W) + (beta @ W + b)
    w_f32 = W.astype(jnp.float32)
    w_eff = (gamma.astype(jnp.float32)[:, None] * w_f32).astype(jnp.bfloat16)
    b_eff = (beta.astype(jnp.float32) @ w_f32
             + bias.astype(jnp.float32)).reshape(1, Dout)

    w_bytes = D * Dout * w_eff.dtype.itemsize           # bf16, single-buffered
    resident = (not force_tiled) and (w_bytes <= budget // 4)

    if resident:
        # Whole bf16 W lives in VMEM; single grid axis over row tiles; no
        # scratch and no pl.when machinery.
        per_row = 2 * D * itemsize + 2 * Dout * out_itemsize
        fixed = w_bytes + Dout * 4
        tm = _pick_tm(M, per_row, int(budget * 0.6) - fixed)
        Mp = _round_up(M, tm)
        xp = jnp.pad(x2d, ((0, Mp - M), (0, 0))) if Mp != M else x2d

        cost = pl.CostEstimate(
            flops=int(2 * Mp * D * Dout + 8 * Mp * D),
            transcendentals=int(Mp),
            bytes_accessed=int(Mp * D * itemsize + Mp * Dout * out_itemsize
                               + w_bytes + Dout * 4),
        )
        out = pl.pallas_call(
            prenorm_linear_resident_kernel,
            out_shape=jax.ShapeDtypeStruct((Mp, Dout), x2d.dtype),
            grid_spec=pltpu.PrefetchScalarGridSpec(
                num_scalar_prefetch=0,
                grid=(Mp // tm,),
                in_specs=[
                    pl.BlockSpec((tm, D), lambda i: (i, 0)),
                    pl.BlockSpec((D, Dout), lambda i: (0, 0),
                                 pipeline_mode=pl.Buffered(1)),
                    pl.BlockSpec((1, Dout), lambda i: (0, 0),
                                 pipeline_mode=pl.Buffered(1)),
                ],
                out_specs=pl.BlockSpec((tm, Dout), lambda i: (i, 0)),
            ),
            compiler_params=pltpu.CompilerParams(
                dimension_semantics=("parallel",),
                vmem_limit_bytes=int(budget),
            ),
            cost_estimate=cost,
        )(xp, w_eff, b_eff)
        return out[:M] if Mp != M else out

    # Fallback: W too large to keep resident -> tile Dout; normalized row tile
    # kept in a bf16 VMEM scratch across the inner ("arbitrary") j axis.
    if force_tiled and Dout % 128 == 0 and Dout > 128:
        tn = 128                                   # test hook: force > 1 j step
    else:
        tn = _pick_tn(Dout, D, w_eff.dtype.itemsize, budget // 4)
    per_row = 2 * D * itemsize + 2 * tn * out_itemsize + D * 2   # + bf16 scratch
    fixed = 2 * D * tn * w_eff.dtype.itemsize + 2 * tn * 4
    tm = _pick_tm(M, per_row, int(budget * 0.6) - fixed)
    Mp = _round_up(M, tm)
    xp = jnp.pad(x2d, ((0, Mp - M), (0, 0))) if Mp != M else x2d

    cost = pl.CostEstimate(
        flops=int(2 * Mp * D * Dout + 8 * Mp * D),
        transcendentals=int(Mp),
        bytes_accessed=int(Mp * D * itemsize + Mp * Dout * out_itemsize
                           + (Mp // tm) * D * Dout * w_eff.dtype.itemsize
                           + Dout * 4),
    )
    out = pl.pallas_call(
        prenorm_linear_tiled_kernel,
        out_shape=jax.ShapeDtypeStruct((Mp, Dout), x2d.dtype),
        grid_spec=pltpu.PrefetchScalarGridSpec(
            num_scalar_prefetch=0,
            grid=(Mp // tm, Dout // tn),
            in_specs=[
                pl.BlockSpec((tm, D), lambda i, j: (i, 0)),
                pl.BlockSpec((D, tn), lambda i, j: (0, j)),
                pl.BlockSpec((1, tn), lambda i, j: (0, j)),
            ],
            out_specs=pl.BlockSpec((tm, tn), lambda i, j: (i, j)),
            scratch_shapes=[pltpu.VMEM((tm, D), jnp.bfloat16)],
        ),
        compiler_params=pltpu.CompilerParams(
            dimension_semantics=("parallel", "arbitrary"),
            vmem_limit_bytes=int(budget),
        ),
        cost_estimate=cost,
    )(xp, w_eff, b_eff)
    return out[:M] if Mp != M else out


# --------------------------------- module -----------------------------------

class Linear:
    """Simple deterministic Linear(dim, dim_out) used as the wrapped fn."""

    def __init__(self, W, b):
        self.W = W
        self.b = b

    def __call__(self, x):
        return jnp.einsum("...d,de->...e", x, self.W) + self.b


class PreNorm:
    """JAX/Pallas equivalent of the PyTorch PreNorm module."""

    def __init__(self, dim, fn):
        # nn.LayerNorm(dim) default init: weight=1, bias=0
        self.gamma = jnp.ones((dim,), jnp.float32)
        self.beta = jnp.zeros((dim,), jnp.float32)
        self.fn = fn

    def __call__(self, x, **kwargs):
        B, N, D = x.shape
        x2d = x.reshape(B * N, D)
        if isinstance(self.fn, Linear) and not kwargs:
            # Fused path: LayerNorm + Linear in one Pallas kernel (normalized
            # activation never round-trips through HBM; LN affine folded in).
            Dout = self.fn.W.shape[1]
            y2d = prenorm_linear_pallas(x2d, self.gamma, self.beta,
                                        self.fn.W, self.fn.b)
            return y2d.reshape(B, N, Dout)
        # Generic path: Pallas LayerNorm, then arbitrary wrapped fn (plain JAX).
        y = layernorm_pallas(x2d, self.gamma, self.beta).reshape(B, N, D)
        return self.fn(y, **kwargs)


# ---------------------------------- demo -------------------------------------

if __name__ == "__main__":
    key = jax.random.PRNGKey(0)
    B, N, D = 2, 8, 32
    kx, kw, kb, kx2, kw2 = jax.random.split(key, 5)
    x = jax.random.normal(kx, (B, N, D), dtype=jnp.float32)
    W = jax.random.normal(kw, (D, D), dtype=jnp.float32) * 0.02
    b = jax.random.normal(kb, (D,), dtype=jnp.float32) * 0.02

    # Pure-JAX LayerNorm reference (biased var, eps=1e-5, weight=1, bias=0).
    mean = jnp.mean(x, axis=-1, keepdims=True)
    var = jnp.mean((x - mean) ** 2, axis=-1, keepdims=True)
    ln_ref = (x - mean) * jax.lax.rsqrt(var + 1e-5)

    def q(a):  # bf16 quantization (the kernel feeds the MXU in bf16)
        return a.astype(jnp.bfloat16).astype(jnp.float32)

    # 1) Fused PreNorm(Linear), W VMEM-resident path.
    module_fused = PreNorm(D, Linear(W, b))
    out_fused = jax.block_until_ready(module_fused(x))
    ref_fused = jnp.einsum("bnd,de->bne", q(ln_ref), q(W)) + b
    assert out_fused.shape == (B, N, D)
    assert jnp.allclose(out_fused, ref_fused, atol=1e-2, rtol=1e-2), \
        "fused (resident) PreNorm mismatch vs bf16 reference"

    # 2) Fused tiled-fallback path (forced), lane-dense dims, 2 column tiles.
    D2, Dout2 = 128, 256
    x2 = jax.random.normal(kx2, (B, N, D2), dtype=jnp.float32)
    W2 = jax.random.normal(kw2, (D2, Dout2), dtype=jnp.float32) * 0.02
    b2 = jnp.zeros((Dout2,), jnp.float32)
    g2 = jnp.ones((D2,), jnp.float32)
    z2 = jnp.zeros((D2,), jnp.float32)
    out_tiled = jax.block_until_ready(
        prenorm_linear_pallas(x2.reshape(B * N, D2), g2, z2, W2, b2,
                              force_tiled=True))
    mean2 = jnp.mean(x2, axis=-1, keepdims=True)
    var2 = jnp.mean((x2 - mean2) ** 2, axis=-1, keepdims=True)
    ln2 = (x2 - mean2) * jax.lax.rsqrt(var2 + 1e-5)
    ref_tiled = (jnp.einsum("bnd,de->bne", q(ln2), q(W2)) + b2).reshape(B * N, Dout2)
    assert out_tiled.shape == (B * N, Dout2)
    assert jnp.allclose(out_tiled, ref_tiled, atol=1e-2, rtol=1e-2), \
        "fused (tiled) PreNorm mismatch vs bf16 reference"

    # 3) Generic-fn path (arbitrary wrapped callable): Pallas LN + plain JAX fn.
    gelu_fn = jax.nn.gelu
    module_generic = PreNorm(D, gelu_fn)
    out_generic = jax.block_until_ready(module_generic(x))
    ref_generic = gelu_fn(ln_ref)
    assert out_generic.shape == (B, N, D)
    assert jnp.allclose(out_generic, ref_generic, atol=1e-5, rtol=1e-5), \
        "generic PreNorm mismatch vs reference"

    print("KERNEL_OK")
</pallas_src>

<mosaic_0001>
module attributes {stable_mosaic.version = 11 : i64} {
  func.func @prenorm_linear_resident_kernel(%arg0: i32, %arg1: memref<16x32xf32, #tpu.memory_space<vmem>>, %arg2: memref<32x32xbf16, #tpu.memory_space<vmem>>, %arg3: memref<1x32xf32, #tpu.memory_space<vmem>>, %arg4: memref<16x32xf32, #tpu.memory_space<vmem>>) attributes {dimension_semantics = [#tpu.dimension_semantics<parallel>], iteration_bounds = array<i64: 1>, scalar_prefetch = 0 : i64, scratch_operands = 0 : i64, tpu.core_type = #tpu.core_type<tc>, window_params = [{transform_indices = @transform_0, window_bounds = array<i64: 16, 32>}, {pipeline_mode = #tpu.pipeline_mode<synchronous>, transform_indices = @transform_1, window_bounds = array<i64: 32, 32>}, {pipeline_mode = #tpu.pipeline_mode<synchronous>, transform_indices = @transform_2, window_bounds = array<i64: 1, 32>}, {transform_indices = @transform_3, window_bounds = array<i64: 16, 32>}]} {
    %c0 = arith.constant 0 : index
    %c0_0 = arith.constant 0 : index
    %0 = vector.load %arg1[%c0, %c0_0] : memref<16x32xf32, #tpu.memory_space<vmem>>, vector<16x32xf32>
    %cst = arith.constant dense<0.000000e+00> : vector<16xf32>
    %1 = vector.multi_reduction <add>, %0, %cst [1] : vector<16x32xf32> to vector<16xf32>
    %2 = vector.shape_cast %1 : vector<16xf32> to vector<16x1xf32>
    %cst_1 = arith.constant 3.200000e+01 : f32
    %3 = vector.broadcast %cst_1 : f32 to vector<16x1xf32>
    %4 = arith.divf %2, %3 : vector<16x1xf32>
    %5 = vector.broadcast %4 : vector<16x1xf32> to vector<16x32xf32>
    %6 = arith.subf %0, %5 : vector<16x32xf32>
    %7 = arith.mulf %6, %6 : vector<16x32xf32>
    %cst_2 = arith.constant dense<0.000000e+00> : vector<16xf32>
    %8 = vector.multi_reduction <add>, %7, %cst_2 [1] : vector<16x32xf32> to vector<16xf32>
    %9 = vector.shape_cast %8 : vector<16xf32> to vector<16x1xf32>
    %cst_3 = arith.constant 3.200000e+01 : f32
    %10 = vector.broadcast %cst_3 : f32 to vector<16x1xf32>
    %11 = arith.divf %9, %10 : vector<16x1xf32>
    %cst_4 = arith.constant 9.99999974E-6 : f32
    %12 = vector.broadcast %cst_4 : f32 to vector<16x1xf32>
    %13 = arith.addf %11, %12 : vector<16x1xf32>
    %14 = math.rsqrt %13 : vector<16x1xf32>
    %15 = vector.broadcast %14 : vector<16x1xf32> to vector<16x32xf32>
    %16 = arith.mulf %6, %15 : vector<16x32xf32>
    %17 = arith.truncf %16 : vector<16x32xf32> to vector<16x32xbf16>
    %c0_5 = arith.constant 0 : index
    %c0_6 = arith.constant 0 : index
    %18 = vector.load %arg2[%c0_5, %c0_6] : memref<32x32xbf16, #tpu.memory_space<vmem>>, vector<32x32xbf16>
    %cst_7 = arith.constant dense<0.000000e+00> : vector<16x32xf32>
    %19 = tpu.matmul %17, %18, %cst_7 {dimension_numbers = #tpu.dot_dimension_numbers<[1], [0], [0], [1], [0, 0, 1, 1], [], []>} : vector<16x32xbf16>, vector<32x32xbf16>, vector<16x32xf32> -> vector<16x32xf32>
    %c0_8 = arith.constant 0 : index
    %c0_9 = arith.constant 0 : index
    %20 = vector.load %arg3[%c0_8, %c0_9] : memref<1x32xf32, #tpu.memory_space<vmem>>, vector<1x32xf32>
    %21 = vector.broadcast %20 : vector<1x32xf32> to vector<16x32xf32>
    %22 = arith.addf %19, %21 : vector<16x32xf32>
    %c0_10 = arith.constant 0 : index
    %c0_11 = arith.constant 0 : index
    %23 = vector.load %arg4[%c0_10, %c0_11] : memref<16x32xf32, #tpu.memory_space<vmem>>, vector<16x32xf32>
    tpu.vector_store %arg4[%c0_10, %c0_11], %22 {strides = array<i32>} : memref<16x32xf32, #tpu.memory_space<vmem>>, vector<16x32xf32>,
    return
  }
  func.func @transform_0(%arg0: i32) -> (i32, i32) {
    %c0_i32 = arith.constant 0 : i32
    %c0_i32_0 = arith.constant 0 : i32
    return %arg0, %c0_i32 : i32, i32
  }
  func.func @transform_1(%arg0: i32) -> (i32, i32) {
    %c0_i32 = arith.constant 0 : i32
    %c0_i32_0 = arith.constant 0 : i32
    %c0_i32_1 = arith.constant 0 : i32
    return %c0_i32, %c0_i32_0 : i32, i32
  }
  func.func @transform_2(%arg0: i32) -> (i32, i32) {
    %c0_i32 = arith.constant 0 : i32
    %c0_i32_0 = arith.constant 0 : i32
    %c0_i32_1 = arith.constant 0 : i32
    return %c0_i32, %c0_i32_0 : i32, i32
  }
  func.func @transform_3(%arg0: i32) -> (i32, i32) {
    %c0_i32 = arith.constant 0 : i32
    %c0_i32_0 = arith.constant 0 : i32
    return %arg0, %c0_i32 : i32, i32
  }
}

</mosaic_0001>

<llo_original>
// kernel: tpu_custom_call.1
$region0: #{tpu_custom_call.1}
  #allocation0 [shape = 'u32[]', space=smem, size = 0x4, offset = 0x4, fixed_abs, tag = 'smem constant byte address 0x4 - core index']
  #allocation1 [shape = 'u32[72,128]{1,0:T(1,128)}', space=vmem, size = 0x9000, scoped, tag = 'internal scratch']
  %s0 = inlined_call_operand.hbm [shape: f32[16,32], index: 0, kind: input, shape index: {}]
  %s1 = inlined_call_operand.hbm [shape: bf16[32,32], index: 1, kind: input, shape index: {}]
  %s2 = inlined_call_operand.vmem [shape: f32[1,32], index: 2, kind: input, shape index: {}]
  %s3 = inlined_call_operand.hbm [shape: f32[16,32], index: 3, kind: output, shape index: {}]
  %s4 = sld [smem:[#allocation0]]
  $region30: #{tpu_custom_call.1} parent=0
    _
  %s6 = ssub.s32 1, %s4
  %s7 = scalar_select 0, %s6, %s4
  $region1: #{tpu_custom_call.1} parent=0
    #allocation2 [shape = 'u8[8192]{0}', space=vmem, size = 0x2000, scoped, tag = 'input window, operand 0, single buffered']
    #allocation3 [shape = 's32[1]{0}', space=sflag, size = 0x4, scoped, tag = 'scoped memory for tpu_custom_call.1']
    #allocation4 [shape = 's32[1]{0}', space=sflag, size = 0x4, scoped, tag = 'scoped memory for tpu_custom_call.1']
    #allocation5 [shape = 'u8[8192]{0}', space=vmem, size = 0x2000, scoped, tag = 'input window, operand 1, single buffered']
    #allocation6 [shape = 's32[1]{0}', space=sflag, size = 0x4, scoped, tag = 'scoped memory for tpu_custom_call.1']
    #allocation7 [shape = 'u8[8192]{0}', space=vmem, size = 0x2000, scoped, tag = 'output window, operand 0, single buffered']
    %8 = vsyncpa [#allocation3], 0
    %9 = vsyncpa [#allocation6], 0
    %10 = vsyncpa [#allocation4], 0
    // Predicated region
    $region2: #{tpu_custom_call.1} parent=1 // pred_check
      _
    $region3: #{tpu_custom_call.1} parent=1 // pred_check_branch
      %12 = sbr.rel (0) target = $region5
    $region4: #{tpu_custom_call.1} parent=1 // pred_region
      %14 = vsyncadd [#allocation3], 0
      %s15 = sshll.u32 %s0, 4
      %s16 = int_to_ptr.hbm [resolvable:$true] %s15
      %s17 = sshll.u32 [#allocation2], 4
      %s18 = int_to_ptr.vmem [resolvable:$true] %s17
      %23 = dma.hbm_to_vmem [thread:$0]  %s16, 256, %s18, [#allocation3], 128, 128, 8
    $region5: #{tpu_custom_call.1} parent=1 // pred_fallthru
      _
    // Predicated region
    $region6: #{tpu_custom_call.1} parent=1 // pred_check
      _
    $region7: #{tpu_custom_call.1} parent=1 // pred_check_branch
      %25 = sbr.rel (0) target = $region9
    $region8: #{tpu_custom_call.1} parent=1 // pred_region
      %27 = vsyncadd [#allocation6], 0
      %s28 = sshll.u32 %s1, 4
      %s29 = int_to_ptr.hbm [resolvable:$true] %s28
      %s30 = sshll.u32 [#allocation5], 4
      %s31 = int_to_ptr.vmem [resolvable:$true] %s30
      %36 = dma.hbm_to_vmem [thread:$0]  %s29, 256, %s31, [#allocation6], 64, 64, 4
    $region9: #{tpu_custom_call.1} parent=1 // pred_fallthru
      _
    // Predicated region
    $region10: #{tpu_custom_call.1} parent=1 // pred_check
      _
    $region11: #{tpu_custom_call.1} parent=1 // pred_check_branch
      %38 = sbr.rel (0) target = $region13
    $region12: #{tpu_custom_call.1} parent=1 // pred_region
      _
    $region13: #{tpu_custom_call.1} parent=1 // pred_fallthru
      _
    // Predicated region
    $region14: #{tpu_custom_call.1} parent=1 // pred_check
      _
    $region15: #{tpu_custom_call.1} parent=1 // pred_check_branch
      %40 = sbr.rel (0) target = $region17
    $region16: #{tpu_custom_call.1} parent=1 // pred_region
      %42 = dma.done [#allocation3], 256
    $region17: #{tpu_custom_call.1} parent=1 // pred_fallthru
      _
    // Predicated region
    $region18: #{tpu_custom_call.1} parent=1 // pred_check
      _
    $region19: #{tpu_custom_call.1} parent=1 // pred_check_branch
      %44 = sbr.rel (0) target = $region21
    $region20: #{tpu_custom_call.1} parent=1 // pred_region
      %46 = dma.done [#allocation6], 256
    $region21: #{tpu_custom_call.1} parent=1 // pred_fallthru
      _
    %v48 = vld [vmem:[#allocation2] sm:$0xff]
    %v49 = vld [vmem:[#allocation2 + $0x8] sm:$0xff]
    %vm50 = vcmask 261120
    %v51 = vsel %vm50, %v48, 0.0
    %52 = vadd.xlane.f32.xlu0 %v51
    %v53 = vpop.xlane.xlu0 %52
    %v54 = vsel %vm50, %v49, 0.0
    %55 = vadd.xlane.f32.xlu0 %v54
    %v56 = vpop.xlane.xlu0 %55
    %v57 = vrcp.pop 32.0
    %v58 = vmul.f32 32.0, %v57
    %v59 = vsub.f32 1.0, %v58
    %v60 = vmul.f32 %v57, %v59
    %v61 = vadd.f32 %v57, %v60
    %vm62 = vweird.f32 %v57
    %v63 = vsel %vm62, %v57, %v61
    %v64 = vmul.f32 %v53, %v63
    %v65 = vmul.f32 %v56, %v63
    %v66 = vsub.f32 %v48, %v64
    %v67 = vsub.f32 %v49, %v65
    %v68 = vmul.f32 %v66, %v66
    %v69 = vmul.f32 %v67, %v67
    %v70 = vsel %vm50, %v68, 0.0
    %71 = vadd.xlane.f32.xlu0 %v70
    %v72 = vpop.xlane.xlu0 %71
    %v73 = vsel %vm50, %v69, 0.0
    %74 = vadd.xlane.f32.xlu0 %v73
    %v75 = vpop.xlane.xlu0 %74
    %v76 = vmul.f32 %v72, %v63
    %v77 = vmul.f32 %v75, %v63
    %v78 = vadd.f32 %v76, 1e-05
    %v79 = vadd.f32 %v77, 1e-05
    %v80 = vrsqrt.pop %v78
    %v81 = vmul.f32 %v80, %v78
    %v82 = vmul.f32 %v81, %v80
    %v83 = vmul.f32 0.5, %v82
    %v84 = vsub.f32 1.5, %v83
    %v85 = vmul.f32 %v80, %v84
    %vm86 = vweird.f32 %v78
    %vm87 = vweird.f32 %v80
    %vm88 = vmor %vm86, %vm87
    %v89 = vsel %vm88, %v80, %v85
    %v90 = vrsqrt.pop %v79
    %v91 = vmul.f32 %v90, %v79
    %v92 = vmul.f32 %v91, %v90
    %v93 = vmul.f32 0.5, %v92
    %v94 = vsub.f32 1.5, %v93
    %v95 = vmul.f32 %v90, %v94
    %vm96 = vweird.f32 %v79
    %vm97 = vweird.f32 %v90
    %vm98 = vmor %vm96, %vm97
    %v99 = vsel %vm98, %v90, %v95
    %v100 = vmul.f32 %v66, %v89
    %v101 = vmul.f32 %v67, %v99
    %v102 = vpack.c.bf16 %v101, %v100
    %v103 = vld [vmem:[#allocation5] sm:$0xf]
    %v104 = vld [vmem:[#allocation5 + $0x4] sm:$0xf]
    %v105 = vld [vmem:[#allocation5 + $0x8] sm:$0xf]
    %v106 = vld [vmem:[#allocation5 + $0xc] sm:$0xf]
    %v107 = vld [vmem:[%s2] sm:$0x1]
    %v109 = vperm.slane %v107, 0
    %v115 = vunpack.c.l.b16 %v103
    %v116 = vunpack.c.l.b16 %v104
    %v117 = vunpack.c.l.b16 %v105
    %v118 = vunpack.c.l.b16 %v106
    %v119 = vpack.c.b16 %v116, %v115
    %v120 = vpack.c.b16 %v118, %v117
    %v124 = vsel %vm50, %v102, 0
    %126 = vmatpush.bf16.msra.mxu0 0
    %127 = vmatpush.bf16.msra.mxu0 0
    %128 = vmatpush.bf16.msra.mxu0 0
    %129 = vmatpush.bf16.msra.mxu0 0
    %130 = vmatpush.bf16.msra.mxu0 0
    %131 = vmatpush.bf16.msra.mxu0 0
    %132 = vmatpush.bf16.msra.mxu0 %v120
    %133 = vmatpush.bf16.msra.mxu0 %v119
    %134 = vmatmul.bf16.gmra.mxu0 %v124
    %v135 = vpop.f32.mrf.mxu0
    %v136 = vadd.f32 %v109, %v135
    %v137 = vpop.f32.mrf.mxu0
    %v138 = vadd.f32 %v109, %v137
    %139 = vdwg.mxu0
    %140 = vst.msk [vmem:[#allocation7] sm:$0xff] %vm50, %v136
    %141 = vst.msk [vmem:[#allocation7 + $0x8] sm:$0xff] %vm50, %v138
    // Predicated region
    $region22: #{tpu_custom_call.1} parent=1 // pred_check
      _
    $region23: #{tpu_custom_call.1} parent=1 // pred_check_branch
      %143 = sbr.rel (0) target = $region25
    $region24: #{tpu_custom_call.1} parent=1 // pred_region
      %145 = vsyncadd [#allocation4], 0
      %s146 = sshll.u32 [#allocation7], 4
      %s147 = int_to_ptr.vmem [resolvable:$true] %s146
      %s148 = sshll.u32 %s3, 4
      %s149 = int_to_ptr.hbm [resolvable:$true] %s148
      %154 = dma.vmem_to_hbm [thread:$0]  %s147, 256, %s149, [#allocation4], 128, 128, 8
    $region25: #{tpu_custom_call.1} parent=1 // pred_fallthru
      _
    // Predicated region
    $region26: #{tpu_custom_call.1} parent=1 // pred_check
      _
    $region27: #{tpu_custom_call.1} parent=1 // pred_check_branch
      %156 = sbr.rel (0) target = $region29
    $region28: #{tpu_custom_call.1} parent=1 // pred_region
      %158 = dma.done [#allocation4], 256
    $region29: #{tpu_custom_call.1} parent=1 // pred_fallthru
      _
    %159 = vsyncpa [#allocation3], 1
    %160 = vsyncpa [#allocation6], 1
    %161 = vsyncpa [#allocation4], 1

</llo_original>
